<compile_context>
chip_gen: v7x
topology: tpu7x:2x2x1
jax: 0.10.0
libtpu: 0.0.40
codegen_flags: <defaults>
</compile_context>

<pallas_src>
import math

import jax
import jax.numpy as jnp
from jax.experimental import pallas as pl
from jax.experimental.pallas import tpu as pltpu


# ---------------------------------------------------------------------------
# Copy path (default): lane-dense tiled memcpy at HBM-roofline speed.
# ---------------------------------------------------------------------------
def _copy_kernel(x_ref, o_ref):
    # Whole-tile, lane-dense copy of an (nb, kb) block.
    o_ref[...] = x_ref[...]


def _target_block_bytes():
    """Per-buffer block budget (4 pipeline buffers total: in+out, 2x buffered)."""
    try:
        info = pltpu.get_tpu_info()
        vmem = getattr(info, "vmem_capacity_bytes", None)
        if vmem is not None and vmem <= (64 << 20):
            # v7x: only 64 MiB physical VMEM but 3.2 TB/s HBM -> larger tiles
            # to amortize the ~0.35 us per-grid-step overhead (4 x 6 = 24 MiB).
            return 6 << 20
    except Exception:
        pass
    # v5e / v6e (128 MiB physical VMEM): 4 x 4 MiB = 16 MiB, well inside the
    # 32 MiB scoped limit requested below.
    return 4 << 20


def _pick_blocks(n, k, dtype, target_bytes):
    """Jointly size (nb, kb): lane-dense, dtype-aware, ~target_bytes per block.

    Block dims only need to be multiples of (sublane, 128) -- they do NOT need
    to divide N / K (Pallas masks the trailing partial block) -- so there is no
    full-dimension fallback that could exceed the VMEM budget.
    """
    itemsize = jnp.dtype(dtype).itemsize
    row_mult = max(8, 32 // itemsize)           # 8 f32, 16 bf16, 32 int8/fp8
    budget_elems = max(1, target_bytes // itemsize)

    # Lane (last) dim: as wide as the budget allows with a minimal row block.
    if k < 128:
        kb = k                                  # full dim is always legal
    else:
        min_rows = row_mult if n >= row_mult else n
        kb = (budget_elems // max(1, min_rows)) // 128 * 128
        kb = max(128, min(kb, (k // 128) * 128))

    # Row (second-to-last) dim: fill the remaining budget with rows (important
    # when K is small -- avoids many tiny blocks dominated by step overhead).
    if n <= row_mult:
        nb = n                                  # full dim is always legal
    else:
        nb = (budget_elems // max(1, kb)) // row_mult * row_mult
        nb = max(row_mult, min(nb, (n // row_mult) * row_mult))

    return nb, kb


def flatten(x):
    """Pallas equivalent of `x.reshape(x.shape[0], -1)` (copying path)."""
    N = x.shape[0]
    K = math.prod(x.shape[1:]) if len(x.shape) > 1 else 1

    # Free metadata reshape (contiguous row-major -> (N, K)); the kernel only
    # has to move lane-dense 2D tiles.
    x2 = x.reshape(N, K)

    itemsize = jnp.dtype(x.dtype).itemsize
    nb, kb = _pick_blocks(N, K, x.dtype, _target_block_bytes())
    grid = (pl.cdiv(N, nb), pl.cdiv(K, kb))

    return pl.pallas_call(
        _copy_kernel,
        out_shape=jax.ShapeDtypeStruct((N, K), x.dtype),
        grid_spec=pltpu.PrefetchScalarGridSpec(
            num_scalar_prefetch=0,
            grid=grid,
            in_specs=[pl.BlockSpec((nb, kb), lambda i, j: (i, j))],
            out_specs=pl.BlockSpec((nb, kb), lambda i, j: (i, j)),
        ),
        compiler_params=pltpu.CompilerParams(
            # Independent axes -> shard across v7x's two TensorCores.
            dimension_semantics=("parallel", "parallel"),
            # Room for 4 pipeline buffers of the block sizes chosen above;
            # 32 MiB <= physical VMEM on v5e / v6e / v7x.
            vmem_limit_bytes=32 * 1024 * 1024,
        ),
        cost_estimate=pl.CostEstimate(
            flops=0,
            transcendentals=0,
            bytes_accessed=2 * N * K * itemsize,
        ),
    )(x2)


# ---------------------------------------------------------------------------
# Donated path: zero HBM traffic when the caller can donate the input.
# Use under jax.jit(..., donate_argnums=...) so XLA can truly alias buffers;
# without donation XLA inserts one defensive copy (still correct).
# ---------------------------------------------------------------------------
def _alias_kernel(x_ref, o_ref):
    del x_ref
    # Output aliases the input buffer: nothing to move.  `touch` registers a
    # read/write dependency so the aliased output counts as produced.
    pltpu.touch(o_ref)


def flatten_donated(x):
    """Pallas equivalent of `x.reshape(x.shape[0], -1)` with output aliased to
    the (donated) input -- no HBM read/write of the payload at all."""
    N = x.shape[0]
    K = math.prod(x.shape[1:]) if len(x.shape) > 1 else 1
    x2 = x.reshape(N, K)
    return pl.pallas_call(
        _alias_kernel,
        out_shape=jax.ShapeDtypeStruct((N, K), x.dtype),
        in_specs=[pl.BlockSpec(memory_space=pl.ANY)],
        out_specs=pl.BlockSpec(memory_space=pl.ANY),
        input_output_aliases={0: 0},
    )(x2)


if __name__ == "__main__":
    key = jax.random.PRNGKey(0)
    # Small conv-net-like feature map: (N, C, H, W)
    x = jax.random.normal(key, (2, 4, 16, 16), dtype=jnp.float32)

    out = flatten(x)
    out = jax.block_until_ready(out)

    ref = x.reshape(x.shape[0], -1)
    assert out.shape == ref.shape, (out.shape, ref.shape)
    assert out.dtype == ref.dtype, (out.dtype, ref.dtype)
    assert bool(jnp.array_equal(out, ref)), "flatten kernel mismatch"

    print("KERNEL_OK")
</pallas_src>

<mosaic_0001>
module attributes {stable_mosaic.version = 11 : i64} {
  func.func @_copy_kernel(%arg0: i32, %arg1: i32, %arg2: memref<2x1024xf32, #tpu.memory_space<vmem>>, %arg3: memref<2x1024xf32, #tpu.memory_space<vmem>>) attributes {dimension_semantics = [#tpu.dimension_semantics<parallel>, #tpu.dimension_semantics<parallel>], iteration_bounds = array<i64: 1, 1>, scalar_prefetch = 0 : i64, scratch_operands = 0 : i64, tpu.core_type = #tpu.core_type<tc>, window_params = [{transform_indices = @transform_0, window_bounds = array<i64: 2, 1024>}, {transform_indices = @transform_1, window_bounds = array<i64: 2, 1024>}]} {
    %c0 = arith.constant 0 : index
    %c0_0 = arith.constant 0 : index
    %0 = vector.load %arg2[%c0, %c0_0] : memref<2x1024xf32, #tpu.memory_space<vmem>>, vector<2x1024xf32>
    %c0_1 = arith.constant 0 : index
    %c0_2 = arith.constant 0 : index
    %1 = vector.load %arg3[%c0_1, %c0_2] : memref<2x1024xf32, #tpu.memory_space<vmem>>, vector<2x1024xf32>
    tpu.vector_store %arg3[%c0_1, %c0_2], %0 {strides = array<i32>} : memref<2x1024xf32, #tpu.memory_space<vmem>>, vector<2x1024xf32>,
    return
  }
  func.func @transform_0(%arg0: i32, %arg1: i32) -> (i32, i32) {
    %c0_i32 = arith.constant 0 : i32
    return %arg0, %arg1 : i32, i32
  }
  func.func @transform_1(%arg0: i32, %arg1: i32) -> (i32, i32) {
    %c0_i32 = arith.constant 0 : i32
    return %arg0, %arg1 : i32, i32
  }
}

</mosaic_0001>

<llo_original>
// kernel: tpu_custom_call.1
$region0: #{tpu_custom_call.1}
  #allocation0 [shape = 'u32[]', space=smem, size = 0x4, offset = 0x4, fixed_abs, tag = 'smem constant byte address 0x4 - core index']
  #allocation1 [shape = 'u32[144,128]{1,0:T(1,128)}', space=vmem, size = 0x12000, scoped, tag = 'internal scratch']
  %s0 = inlined_call_operand.hbm [shape: f32[2,1024], index: 0, kind: input, shape index: {}]
  %s1 = inlined_call_operand.hbm [shape: f32[2,1024], index: 1, kind: output, shape index: {}]
  %s2 = sld [smem:[#allocation0]]
  $region18: #{tpu_custom_call.1} parent=0
    _
  %s4 = ssub.s32 1, %s2
  %s5 = scalar_select 0, %s4, %s2
  $region1: #{tpu_custom_call.1} parent=0
    #allocation2 [shape = 'u8[8192]{0}', space=vmem, size = 0x2000, scoped, tag = 'input window, operand 0, single buffered']
    #allocation3 [shape = 's32[1]{0}', space=sflag, size = 0x4, scoped, tag = 'scoped memory for tpu_custom_call.1']
    #allocation4 [shape = 's32[1]{0}', space=sflag, size = 0x4, scoped, tag = 'scoped memory for tpu_custom_call.1']
    #allocation5 [shape = 'u8[8192]{0}', space=vmem, size = 0x2000, scoped, tag = 'output window, operand 0, single buffered']
    %6 = vsyncpa [#allocation3], 0
    %7 = vsyncpa [#allocation4], 0
    // Predicated region
    $region2: #{tpu_custom_call.1} parent=1 // pred_check
      _
    $region3: #{tpu_custom_call.1} parent=1 // pred_check_branch
      %9 = sbr.rel (0) target = $region5
    $region4: #{tpu_custom_call.1} parent=1 // pred_region
      %s11 = ssub.s32 256, 256
      %12 = vsyncadd [#allocation3], %s11
      %s14 = sshll.u32 [#allocation2], 4
      %s15 = int_to_ptr.vmem [resolvable:$true] %s14
      %17 = dma.hbm_to_vmem [thread:$0]  %s0, 256, %s15, [#allocation3]
    $region5: #{tpu_custom_call.1} parent=1 // pred_fallthru
      _
    // Predicated region
    $region6: #{tpu_custom_call.1} parent=1 // pred_check
      _
    $region7: #{tpu_custom_call.1} parent=1 // pred_check_branch
      %19 = sbr.rel (0) target = $region9
    $region8: #{tpu_custom_call.1} parent=1 // pred_region
      %20 = dma.done [#allocation3], 256
    $region9: #{tpu_custom_call.1} parent=1 // pred_fallthru
      _
    %v21 = vld [vmem:[#allocation2] sm:$0xff]
    %v22 = vld [vmem:[#allocation2 + $0x8] sm:$0xff]
    %23 = vst [vmem:[#allocation5] sm:$0xff] %v21
    %24 = vst [vmem:[#allocation5 + $0x8] sm:$0xff] %v22
    // Predicated region
    $region10: #{tpu_custom_call.1} parent=1 // pred_check
      _
    $region11: #{tpu_custom_call.1} parent=1 // pred_check_branch
      %26 = sbr.rel (0) target = $region13
    $region12: #{tpu_custom_call.1} parent=1 // pred_region
      %s28 = ssub.s32 256, 256
      %29 = vsyncadd [#allocation4], %s28
      %s31 = sshll.u32 [#allocation5], 4
      %s32 = int_to_ptr.vmem [resolvable:$true] %s31
      %34 = dma.vmem_to_hbm [thread:$0]  %s32, 256, %s1, [#allocation4]
    $region13: #{tpu_custom_call.1} parent=1 // pred_fallthru
      _
    // Predicated region
    $region14: #{tpu_custom_call.1} parent=1 // pred_check
      _
    $region15: #{tpu_custom_call.1} parent=1 // pred_check_branch
      %36 = sbr.rel (0) target = $region17
    $region16: #{tpu_custom_call.1} parent=1 // pred_region
      %37 = dma.done [#allocation4], 256
    $region17: #{tpu_custom_call.1} parent=1 // pred_fallthru
      _
    %38 = vsyncpa [#allocation3], 1
    %39 = vsyncpa [#allocation4], 1

</llo_original>
